<compile_context>
chip_gen: v7x
topology: tpu7x:2x2x1
jax: 0.10.0
libtpu: 0.0.40
codegen_flags: <defaults>
</compile_context>

<pallas_src>
import functools

import jax
import jax.numpy as jnp
from jax import lax
from jax.experimental import pallas as pl
from jax.experimental.pallas import tpu as pltpu


def _round_up(x, m):
    return (x + m - 1) // m * m


def _logsigmoid(x):
    # Numerically stable: min(x, 0) - log1p(exp(-|x|)); one exp + one log1p.
    return jnp.minimum(x, 0.0) - jnp.log1p(jnp.exp(-jnp.abs(x)))


# ----------------------------------------------------------------------------
# Path R: table-resident fast path (tables live in VMEM, gather via one-hot
# matmul on the otherwise-idle MXU). Grid axis is fully parallel.
# ----------------------------------------------------------------------------
def _resident_kernel(pos_u_ref, pos_v_ref, neg_v_ref,   # (BT, 1) int32 blocks
                     u_tab_ref, v_tab_ref,              # (V, D) resident tables
                     out_ref,                           # (1, 8, 128) f32 partial
                     *, batch_size, batch_tile):
    BT = batch_tile
    t = pl.program_id(0)
    base = t * BT
    V = u_tab_ref.shape[0]

    u_tab = u_tab_ref[...]
    v_tab = v_tab_ref[...]
    col = lax.broadcasted_iota(jnp.int32, (BT, V), 1)

    def gather(idx, tab):
        onehot = (col == idx).astype(tab.dtype)               # (BT, V), exact 0/1
        return jnp.dot(onehot, tab, preferred_element_type=jnp.float32)

    emb_u = gather(pos_u_ref[...], u_tab)                     # (BT, D) f32
    emb_v = gather(pos_v_ref[...], v_tab)
    emb_n = gather(neg_v_ref[...], v_tab)

    s_pos = jnp.sum(emb_u * emb_v, axis=1, keepdims=True)     # (BT, 1)
    s_neg = jnp.sum(emb_u * emb_n, axis=1, keepdims=True)
    ls = _logsigmoid(s_pos) + _logsigmoid(-s_neg)             # (BT, 1)

    row = lax.broadcasted_iota(jnp.int32, (BT, 1), 0)
    valid = (base + row) < batch_size                         # mask padded rows
    tile_loss = -jnp.sum(jnp.where(valid, ls, 0.0))           # f32 scalar

    # Lane-dense per-tile partial (summed in the wrapper).
    out_ref[...] = jnp.zeros(out_ref.shape, out_ref.dtype) + tile_loss


# ----------------------------------------------------------------------------
# Path H: large-table fallback. Tables stay in HBM; only the 3*BT rows each
# tile needs are DMA'd, double-buffered across tiles with shared per-slot
# semaphores and rolled copy loops.
# ----------------------------------------------------------------------------
def _hbm_gather_kernel(pos_u_ref, pos_v_ref, neg_v_ref,   # scalar prefetch (SMEM)
                       u_hbm, v_hbm,                      # tables (HBM, pl.ANY)
                       out_ref,                           # (1, 8, 128) f32 partial
                       u_buf, v_buf, n_buf, sem,          # scratch (2-slot)
                       *, batch_size, batch_tile, num_tiles):
    BT = batch_tile
    t = pl.program_id(0)
    base = t * BT
    slot = t % 2

    def rows_in(tile):
        return jnp.minimum(BT, batch_size - tile * BT)

    def issue(tile, slot_):
        b0 = tile * BT

        def body(i, carry):
            u_row = pos_u_ref[b0 + i]
            v_row = pos_v_ref[b0 + i]
            n_row = neg_v_ref[b0 + i]
            pltpu.make_async_copy(u_hbm.at[pl.ds(u_row, 1), :],
                                  u_buf.at[slot_, pl.ds(i, 1), :],
                                  sem.at[slot_]).start()
            pltpu.make_async_copy(v_hbm.at[pl.ds(v_row, 1), :],
                                  v_buf.at[slot_, pl.ds(i, 1), :],
                                  sem.at[slot_]).start()
            pltpu.make_async_copy(v_hbm.at[pl.ds(n_row, 1), :],
                                  n_buf.at[slot_, pl.ds(i, 1), :],
                                  sem.at[slot_]).start()
            return carry

        # Only valid rows issue DMAs (no wasted fetches on a partial tile).
        lax.fori_loop(0, rows_in(tile), body, 0)

    # Prime the pipeline on the first grid step.
    @pl.when(t == 0)
    def _():
        issue(t, slot)

    # Issue tile t+1's gathers (reads its SMEM indices) BEFORE any wait, so
    # the HBM latency overlaps with this tile's wait+compute.
    @pl.when(t + 1 < num_tiles)
    def _():
        issue(t + 1, 1 - slot)

    # Wait for exactly the copies issued for this tile (shared per-slot sem).
    def wait_body(i, carry):
        pltpu.make_async_copy(u_hbm.at[pl.ds(0, 1), :],
                              u_buf.at[slot, pl.ds(0, 1), :], sem.at[slot]).wait()
        pltpu.make_async_copy(v_hbm.at[pl.ds(0, 1), :],
                              v_buf.at[slot, pl.ds(0, 1), :], sem.at[slot]).wait()
        pltpu.make_async_copy(v_hbm.at[pl.ds(0, 1), :],
                              n_buf.at[slot, pl.ds(0, 1), :], sem.at[slot]).wait()
        return carry

    lax.fori_loop(0, rows_in(t), wait_body, 0)

    emb_u = u_buf[slot].astype(jnp.float32)                   # (BT, D)
    emb_v = v_buf[slot].astype(jnp.float32)
    emb_n = n_buf[slot].astype(jnp.float32)

    s_pos = jnp.sum(emb_u * emb_v, axis=1, keepdims=True)
    s_neg = jnp.sum(emb_u * emb_n, axis=1, keepdims=True)
    ls = _logsigmoid(s_pos) + _logsigmoid(-s_neg)

    row = lax.broadcasted_iota(jnp.int32, (BT, 1), 0)
    valid = (base + row) < batch_size                         # stale rows masked
    tile_loss = -jnp.sum(jnp.where(valid, ls, 0.0))

    out_ref[...] = jnp.zeros(out_ref.shape, out_ref.dtype) + tile_loss


# ----------------------------------------------------------------------------
# Wrapper
# ----------------------------------------------------------------------------
def embedding_net_forward(pos_u, pos_v, neg_v, u_weight, v_weight, *,
                          batch_tile=128, force_hbm_gather=False):
    B = int(pos_u.shape[0])
    V, D = u_weight.shape
    elt = u_weight.dtype.itemsize
    BT = int(min(batch_tile, max(8, _round_up(B, 8))))
    num_tiles = int(pl.cdiv(B, BT))
    Bp = num_tiles * BT

    def prep(idx):
        idx = idx.astype(jnp.int32).reshape(-1)
        if Bp > B:
            idx = jnp.pad(idx, (0, Bp - B))   # pad with row 0; masked in-kernel
        return idx

    # Rough in-kernel VMEM footprint of the table-resident path.
    resident_bytes = (2 * V * D * elt          # both tables resident
                      + 3 * BT * V * 4         # one-hot gather operands
                      + 3 * BT * D * 4)        # gathered f32 rows
    use_resident = (not force_hbm_gather) and resident_bytes <= 24 * 1024 * 1024

    out_shape = jax.ShapeDtypeStruct((num_tiles, 8, 128), jnp.float32)

    if use_resident:
        kernel = functools.partial(_resident_kernel,
                                   batch_size=B, batch_tile=BT)
        partials = pl.pallas_call(
            kernel,
            out_shape=out_shape,
            grid=(num_tiles,),
            in_specs=[pl.BlockSpec((BT, 1), lambda t: (t, 0)),
                      pl.BlockSpec((BT, 1), lambda t: (t, 0)),
                      pl.BlockSpec((BT, 1), lambda t: (t, 0)),
                      pl.BlockSpec((V, D), lambda t: (0, 0)),   # resident table
                      pl.BlockSpec((V, D), lambda t: (0, 0))],  # resident table
            out_specs=pl.BlockSpec((1, 8, 128), lambda t: (t, 0, 0)),
            compiler_params=pltpu.CompilerParams(
                dimension_semantics=("parallel",),
                vmem_limit_bytes=32 * 1024 * 1024),
        )(prep(pos_u)[:, None], prep(pos_v)[:, None], prep(neg_v)[:, None],
          u_weight, v_weight)
    else:
        kernel = functools.partial(_hbm_gather_kernel, batch_size=B,
                                   batch_tile=BT, num_tiles=num_tiles)
        partials = pl.pallas_call(
            kernel,
            out_shape=out_shape,
            grid_spec=pltpu.PrefetchScalarGridSpec(
                num_scalar_prefetch=3,
                grid=(num_tiles,),
                in_specs=[pl.BlockSpec(memory_space=pl.ANY),   # u table in HBM
                          pl.BlockSpec(memory_space=pl.ANY)],  # v table in HBM
                out_specs=pl.BlockSpec((1, 8, 128),
                                       lambda t, pu, pv, nv: (t, 0, 0)),
                scratch_shapes=[pltpu.VMEM((2, BT, D), u_weight.dtype),
                                pltpu.VMEM((2, BT, D), v_weight.dtype),
                                pltpu.VMEM((2, BT, D), v_weight.dtype),
                                pltpu.SemaphoreType.DMA((2,))]),
            compiler_params=pltpu.CompilerParams(
                dimension_semantics=("arbitrary",),
                vmem_limit_bytes=32 * 1024 * 1024),
        )(prep(pos_u), prep(pos_v), prep(neg_v), u_weight, v_weight)

    return jnp.sum(partials[:, 0, 0])


def embedding_net_forward_ref(pos_u, pos_v, neg_v, u_weight, v_weight):
    # Pure-JAX reference mirroring the PyTorch forward.
    emb_u = u_weight[pos_u]
    emb_v = v_weight[pos_v]
    neg_emb_v = v_weight[neg_v]
    score = jax.nn.log_sigmoid(jnp.sum(emb_u * emb_v, axis=1))
    neg_score = jax.nn.log_sigmoid(-jnp.sum(emb_u * neg_emb_v, axis=1))
    return -(jnp.sum(score) + jnp.sum(neg_score))


if __name__ == "__main__":
    vocabulary_size = 64
    embedding_dim = 256
    batch = 8

    key = jax.random.PRNGKey(0)
    k_u, k_v, k_pu, k_pv, k_nv, k_pu2, k_pv2, k_nv2 = jax.random.split(key, 8)

    # The module zero-inits v_embeddings; use small random values here so the
    # v-table gather path is actually exercised by the correctness check.
    init_range = 0.5 / embedding_dim
    u_weight = jax.random.uniform(
        k_u, (vocabulary_size, embedding_dim),
        minval=-init_range, maxval=init_range, dtype=jnp.float32)
    v_weight = jax.random.uniform(
        k_v, (vocabulary_size, embedding_dim),
        minval=-init_range, maxval=init_range, dtype=jnp.float32)

    pos_u = jax.random.randint(k_pu, (batch,), 0, vocabulary_size, dtype=jnp.int32)
    pos_v = jax.random.randint(k_pv, (batch,), 0, vocabulary_size, dtype=jnp.int32)
    neg_v = jax.random.randint(k_nv, (batch,), 0, vocabulary_size, dtype=jnp.int32)

    # Path 1: table-resident fast path (tables fit comfortably in VMEM).
    loss = jax.block_until_ready(
        embedding_net_forward(pos_u, pos_v, neg_v, u_weight, v_weight))
    loss_ref = embedding_net_forward_ref(pos_u, pos_v, neg_v, u_weight, v_weight)
    assert jnp.allclose(loss, loss_ref, rtol=1e-4, atol=1e-5), (loss, loss_ref)

    # Path 2: large-table fallback (double-buffered per-row HBM gathers),
    # exercised with a multi-tile batch including a partial last tile.
    batch2 = 37
    pos_u2 = jax.random.randint(k_pu2, (batch2,), 0, vocabulary_size, dtype=jnp.int32)
    pos_v2 = jax.random.randint(k_pv2, (batch2,), 0, vocabulary_size, dtype=jnp.int32)
    neg_v2 = jax.random.randint(k_nv2, (batch2,), 0, vocabulary_size, dtype=jnp.int32)
    loss2 = jax.block_until_ready(
        embedding_net_forward(pos_u2, pos_v2, neg_v2, u_weight, v_weight,
                              batch_tile=16, force_hbm_gather=True))
    loss2_ref = embedding_net_forward_ref(pos_u2, pos_v2, neg_v2, u_weight, v_weight)
    assert jnp.allclose(loss2, loss2_ref, rtol=1e-4, atol=1e-5), (loss2, loss2_ref)

    print("KERNEL_OK")
</pallas_src>

<mosaic_0001>
module attributes {stable_mosaic.version = 11 : i64} {
  func.func @_resident_kernel(%arg0: i32, %arg1: memref<8x1xi32, #tpu.memory_space<vmem>>, %arg2: memref<8x1xi32, #tpu.memory_space<vmem>>, %arg3: memref<8x1xi32, #tpu.memory_space<vmem>>, %arg4: memref<64x256xf32, #tpu.memory_space<vmem>>, %arg5: memref<64x256xf32, #tpu.memory_space<vmem>>, %arg6: memref<1x8x128xf32, #tpu.memory_space<vmem>>) attributes {dimension_semantics = [#tpu.dimension_semantics<parallel>], iteration_bounds = array<i64: 1>, scalar_prefetch = 0 : i64, scratch_operands = 0 : i64, tpu.core_type = #tpu.core_type<tc>, window_params = [{transform_indices = @transform_0, window_bounds = array<i64: 8, 1>}, {transform_indices = @transform_1, window_bounds = array<i64: 8, 1>}, {transform_indices = @transform_2, window_bounds = array<i64: 8, 1>}, {pipeline_mode = #tpu.pipeline_mode<synchronous>, transform_indices = @transform_3, window_bounds = array<i64: 64, 256>}, {pipeline_mode = #tpu.pipeline_mode<synchronous>, transform_indices = @transform_4, window_bounds = array<i64: 64, 256>}, {transform_indices = @transform_5, window_bounds = array<i64: 1, 8, 128>}]} {
    %c8_i32 = arith.constant 8 : i32
    %0 = arith.muli %arg0, %c8_i32 : i32
    %c0 = arith.constant 0 : index
    %c0_0 = arith.constant 0 : index
    %1 = vector.load %arg4[%c0, %c0_0] : memref<64x256xf32, #tpu.memory_space<vmem>>, vector<64x256xf32>
    %c0_1 = arith.constant 0 : index
    %c0_2 = arith.constant 0 : index
    %2 = vector.load %arg5[%c0_1, %c0_2] : memref<64x256xf32, #tpu.memory_space<vmem>>, vector<64x256xf32>
    %3 = tpu.iota {dimensions = array<i32: 1>} : vector<8x64xi32>
    %c0_3 = arith.constant 0 : index
    %c0_4 = arith.constant 0 : index
    %4 = vector.load %arg1[%c0_3, %c0_4] : memref<8x1xi32, #tpu.memory_space<vmem>>, vector<8x1xi32>
    %5 = vector.broadcast %4 : vector<8x1xi32> to vector<8x64xi32>
    %6 = arith.cmpi eq, %3, %5 : vector<8x64xi32>
    %7 = arith.extui %6 : vector<8x64xi1> to vector<8x64xi32>
    %8 = arith.sitofp %7 : vector<8x64xi32> to vector<8x64xf32>
    %cst = arith.constant dense<0.000000e+00> : vector<8x256xf32>
    %9 = tpu.matmul %8, %1, %cst {dimension_numbers = #tpu.dot_dimension_numbers<[1], [0], [0], [1], [0, 0, 1, 1], [], []>} : vector<8x64xf32>, vector<64x256xf32>, vector<8x256xf32> -> vector<8x256xf32>
    %c0_5 = arith.constant 0 : index
    %c0_6 = arith.constant 0 : index
    %10 = vector.load %arg2[%c0_5, %c0_6] : memref<8x1xi32, #tpu.memory_space<vmem>>, vector<8x1xi32>
    %11 = vector.broadcast %10 : vector<8x1xi32> to vector<8x64xi32>
    %12 = arith.cmpi eq, %3, %11 : vector<8x64xi32>
    %13 = arith.extui %12 : vector<8x64xi1> to vector<8x64xi32>
    %14 = arith.sitofp %13 : vector<8x64xi32> to vector<8x64xf32>
    %cst_7 = arith.constant dense<0.000000e+00> : vector<8x256xf32>
    %15 = tpu.matmul %14, %2, %cst_7 {dimension_numbers = #tpu.dot_dimension_numbers<[1], [0], [0], [1], [0, 0, 1, 1], [], []>} : vector<8x64xf32>, vector<64x256xf32>, vector<8x256xf32> -> vector<8x256xf32>
    %c0_8 = arith.constant 0 : index
    %c0_9 = arith.constant 0 : index
    %16 = vector.load %arg3[%c0_8, %c0_9] : memref<8x1xi32, #tpu.memory_space<vmem>>, vector<8x1xi32>
    %17 = vector.broadcast %16 : vector<8x1xi32> to vector<8x64xi32>
    %18 = arith.cmpi eq, %3, %17 : vector<8x64xi32>
    %19 = arith.extui %18 : vector<8x64xi1> to vector<8x64xi32>
    %20 = arith.sitofp %19 : vector<8x64xi32> to vector<8x64xf32>
    %cst_10 = arith.constant dense<0.000000e+00> : vector<8x256xf32>
    %21 = tpu.matmul %20, %2, %cst_10 {dimension_numbers = #tpu.dot_dimension_numbers<[1], [0], [0], [1], [0, 0, 1, 1], [], []>} : vector<8x64xf32>, vector<64x256xf32>, vector<8x256xf32> -> vector<8x256xf32>
    %22 = arith.mulf %9, %15 : vector<8x256xf32>
    %cst_11 = arith.constant dense<0.000000e+00> : vector<8xf32>
    %23 = vector.multi_reduction <add>, %22, %cst_11 [1] : vector<8x256xf32> to vector<8xf32>
    %24 = vector.shape_cast %23 : vector<8xf32> to vector<8x1xf32>
    %25 = arith.mulf %9, %21 : vector<8x256xf32>
    %cst_12 = arith.constant dense<0.000000e+00> : vector<8xf32>
    %26 = vector.multi_reduction <add>, %25, %cst_12 [1] : vector<8x256xf32> to vector<8xf32>
    %27 = vector.shape_cast %26 : vector<8xf32> to vector<8x1xf32>
    %cst_13 = arith.constant 0.000000e+00 : f32
    %28 = vector.broadcast %cst_13 : f32 to vector<8x1xf32>
    %29 = arith.minimumf %24, %28 : vector<8x1xf32>
    %30 = math.absf %24 : vector<8x1xf32>
    %cst_14 = arith.constant 0.000000e+00 : f32
    %31 = vector.broadcast %cst_14 : f32 to vector<8x1xf32>
    %32 = arith.subf %31, %30 : vector<8x1xf32>
    %33 = math.exp %32 : vector<8x1xf32>
    %34 = math.log1p %33 : vector<8x1xf32>
    %35 = arith.subf %29, %34 : vector<8x1xf32>
    %cst_15 = arith.constant 0.000000e+00 : f32
    %36 = vector.broadcast %cst_15 : f32 to vector<8x1xf32>
    %37 = arith.subf %36, %27 : vector<8x1xf32>
    %cst_16 = arith.constant 0.000000e+00 : f32
    %38 = vector.broadcast %cst_16 : f32 to vector<8x1xf32>
    %39 = arith.minimumf %37, %38 : vector<8x1xf32>
    %40 = math.absf %37 : vector<8x1xf32>
    %cst_17 = arith.constant 0.000000e+00 : f32
    %41 = vector.broadcast %cst_17 : f32 to vector<8x1xf32>
    %42 = arith.subf %41, %40 : vector<8x1xf32>
    %43 = math.exp %42 : vector<8x1xf32>
    %44 = math.log1p %43 : vector<8x1xf32>
    %45 = arith.subf %39, %44 : vector<8x1xf32>
    %46 = arith.addf %35, %45 : vector<8x1xf32>
    %47 = tpu.iota {dimensions = array<i32: 0>} : vector<8x1xi32>
    %48 = vector.broadcast %0 : i32 to vector<8x1xi32>
    %49 = arith.addi %48, %47 : vector<8x1xi32>
    %c8_i32_18 = arith.constant 8 : i32
    %50 = vector.broadcast %c8_i32_18 : i32 to vector<8x1xi32>
    %51 = arith.cmpi slt, %49, %50 : vector<8x1xi32>
    %cst_19 = arith.constant 0.000000e+00 : f32
    %52 = vector.broadcast %cst_19 : f32 to vector<8x1xf32>
    %53 = arith.select %51, %46, %52 : vector<8x1xi1>, vector<8x1xf32>
    %54 = vector.shape_cast %53 : vector<8x1xf32> to vector<1x8x1xf32>
    %cst_20 = arith.constant dense<0.000000e+00> : vector<1xf32>
    %55 = vector.multi_reduction <add>, %54, %cst_20 [1, 2] : vector<1x8x1xf32> to vector<1xf32>
    %56 = vector.shape_cast %55 : vector<1xf32> to vector<1x1x1xf32>
    %57 = vector.extract %56[0, 0, 0] : f32 from vector<1x1x1xf32>
    %cst_21 = arith.constant 0.000000e+00 : f32
    %58 = arith.subf %cst_21, %57 : f32
    %cst_22 = arith.constant 0.000000e+00 : f32
    %59 = vector.broadcast %cst_22 : f32 to vector<1x8x128xf32>
    %60 = vector.broadcast %58 : f32 to vector<1x8x128xf32>
    %61 = arith.addf %59, %60 : vector<1x8x128xf32>
    %c0_23 = arith.constant 0 : index
    %c0_24 = arith.constant 0 : index
    %c0_25 = arith.constant 0 : index
    %62 = vector.load %arg6[%c0_23, %c0_24, %c0_25] : memref<1x8x128xf32, #tpu.memory_space<vmem>>, vector<1x8x128xf32>
    tpu.vector_store %arg6[%c0_23, %c0_24, %c0_25], %61 {strides = array<i32>} : memref<1x8x128xf32, #tpu.memory_space<vmem>>, vector<1x8x128xf32>,
    return
  }
  func.func @transform_0(%arg0: i32) -> (i32, i32) {
    %c0_i32 = arith.constant 0 : i32
    %c0_i32_0 = arith.constant 0 : i32
    return %arg0, %c0_i32 : i32, i32
  }
  func.func @transform_1(%arg0: i32) -> (i32, i32) {
    %c0_i32 = arith.constant 0 : i32
    %c0_i32_0 = arith.constant 0 : i32
    return %arg0, %c0_i32 : i32, i32
  }
  func.func @transform_2(%arg0: i32) -> (i32, i32) {
    %c0_i32 = arith.constant 0 : i32
    %c0_i32_0 = arith.constant 0 : i32
    return %arg0, %c0_i32 : i32, i32
  }
  func.func @transform_3(%arg0: i32) -> (i32, i32) {
    %c0_i32 = arith.constant 0 : i32
    %c0_i32_0 = arith.constant 0 : i32
    %c0_i32_1 = arith.constant 0 : i32
    return %c0_i32, %c0_i32_0 : i32, i32
  }
  func.func @transform_4(%arg0: i32) -> (i32, i32) {
    %c0_i32 = arith.constant 0 : i32
    %c0_i32_0 = arith.constant 0 : i32
    %c0_i32_1 = arith.constant 0 : i32
    return %c0_i32, %c0_i32_0 : i32, i32
  }
  func.func @transform_5(%arg0: i32) -> (i32, i32, i32) {
    %c0_i32 = arith.constant 0 : i32
    %c0_i32_0 = arith.constant 0 : i32
    %c0_i32_1 = arith.constant 0 : i32
    return %arg0, %c0_i32, %c0_i32_0 : i32, i32, i32
  }
}

</mosaic_0001>

<llo_original>
// kernel: tpu_custom_call.1
$region0: #{tpu_custom_call.1}
  #allocation0 [shape = 'u32[]', space=smem, size = 0x4, offset = 0x4, fixed_abs, tag = 'smem constant byte address 0x4 - core index']
  #allocation1 [shape = 'u32[144,128]{1,0:T(1,128)}', space=vmem, size = 0x12000, scoped, tag = 'internal scratch']
  %s0 = inlined_call_operand.vmem [shape: s32[8,1], index: 0, kind: input, shape index: {}]
  %s1 = inlined_call_operand.vmem [shape: s32[8,1], index: 1, kind: input, shape index: {}]
  %s2 = inlined_call_operand.vmem [shape: s32[8,1], index: 2, kind: input, shape index: {}]
  %s3 = inlined_call_operand.hbm [shape: f32[64,256], index: 3, kind: input, shape index: {}]
  %s4 = inlined_call_operand.hbm [shape: f32[64,256], index: 4, kind: input, shape index: {}]
  %s5 = inlined_call_operand.hbm [shape: f32[1,8,128], index: 5, kind: output, shape index: {}]
  %s6 = sld [smem:[#allocation0]]
  $region38: #{tpu_custom_call.1} parent=0
    _
  %s8 = ssub.s32 1, %s6
  %s9 = scalar_select 0, %s8, %s6
  $region1: #{tpu_custom_call.1} parent=0
    #allocation2 [shape = 'u8[65536]{0}', space=vmem, size = 0x10000, scoped, tag = 'input window, operand 3, single buffered']
    #allocation3 [shape = 's32[1]{0}', space=sflag, size = 0x4, scoped, tag = 'scoped memory for tpu_custom_call.1']
    #allocation4 [shape = 's32[1]{0}', space=sflag, size = 0x4, scoped, tag = 'scoped memory for tpu_custom_call.1']
    #allocation5 [shape = 'u8[65536]{0}', space=vmem, size = 0x10000, scoped, tag = 'input window, operand 4, single buffered']
    #allocation6 [shape = 's32[1]{0}', space=sflag, size = 0x4, scoped, tag = 'scoped memory for tpu_custom_call.1']
    #allocation7 [shape = 'u8[4096]{0}', space=vmem, size = 0x1000, scoped, tag = 'output window, operand 0, single buffered']
    %10 = vsyncpa [#allocation3], 0
    %11 = vsyncpa [#allocation6], 0
    %12 = vsyncpa [#allocation4], 0
    // Predicated region
    $region2: #{tpu_custom_call.1} parent=1 // pred_check
      _
    $region3: #{tpu_custom_call.1} parent=1 // pred_check_branch
      %14 = sbr.rel (0) target = $region5
    $region4: #{tpu_custom_call.1} parent=1 // pred_region
      _
    $region5: #{tpu_custom_call.1} parent=1 // pred_fallthru
      _
    // Predicated region
    $region6: #{tpu_custom_call.1} parent=1 // pred_check
      _
    $region7: #{tpu_custom_call.1} parent=1 // pred_check_branch
      %16 = sbr.rel (0) target = $region9
    $region8: #{tpu_custom_call.1} parent=1 // pred_region
      _
    $region9: #{tpu_custom_call.1} parent=1 // pred_fallthru
      _
    // Predicated region
    $region10: #{tpu_custom_call.1} parent=1 // pred_check
      _
    $region11: #{tpu_custom_call.1} parent=1 // pred_check_branch
      %18 = sbr.rel (0) target = $region13
    $region12: #{tpu_custom_call.1} parent=1 // pred_region
      _
    $region13: #{tpu_custom_call.1} parent=1 // pred_fallthru
      _
    // Predicated region
    $region14: #{tpu_custom_call.1} parent=1 // pred_check
      _
    $region15: #{tpu_custom_call.1} parent=1 // pred_check_branch
      %20 = sbr.rel (0) target = $region17
    $region16: #{tpu_custom_call.1} parent=1 // pred_region
      %s22 = ssub.s32 2048, 2048
      %23 = vsyncadd [#allocation3], %s22
      %s24 = sshll.u32 [#allocation2], 4
      %s25 = int_to_ptr.vmem [resolvable:$true] %s24
      %30 = dma.hbm_to_vmem [thread:$0]  %s3, 2048, %s25, [#allocation3], 256, 256, 16
    $region17: #{tpu_custom_call.1} parent=1 // pred_fallthru
      _
    // Predicated region
    $region18: #{tpu_custom_call.1} parent=1 // pred_check
      _
    $region19: #{tpu_custom_call.1} parent=1 // pred_check_branch
      %32 = sbr.rel (0) target = $region21
    $region20: #{tpu_custom_call.1} parent=1 // pred_region
      %s34 = ssub.s32 2048, 2048
      %35 = vsyncadd [#allocation6], %s34
      %s36 = sshll.u32 [#allocation5], 4
      %s37 = int_to_ptr.vmem [resolvable:$true] %s36
      %42 = dma.hbm_to_vmem [thread:$0]  %s4, 2048, %s37, [#allocation6], 256, 256, 16
    $region21: #{tpu_custom_call.1} parent=1 // pred_fallthru
      _
    // Predicated region
    $region22: #{tpu_custom_call.1} parent=1 // pred_check
      _
    $region23: #{tpu_custom_call.1} parent=1 // pred_check_branch
      %44 = sbr.rel (0) target = $region25
    $region24: #{tpu_custom_call.1} parent=1 // pred_region
      %45 = dma.done [#allocation3], 2048
    $region25: #{tpu_custom_call.1} parent=1 // pred_fallthru
      _
    // Predicated region
    $region26: #{tpu_custom_call.1} parent=1 // pred_check
      _
    $region27: #{tpu_custom_call.1} parent=1 // pred_check_branch
      %47 = sbr.rel (0) target = $region29
    $region28: #{tpu_custom_call.1} parent=1 // pred_region
      %48 = dma.done [#allocation6], 2048
    $region29: #{tpu_custom_call.1} parent=1 // pred_fallthru
      _
    %s49 = smul.u32 0, 8
    %v50 = vld [vmem:[#allocation2] sm:$0xff]
    %v51 = vld [vmem:[#allocation2 + $0x8] sm:$0xff]
    %v52 = vld [vmem:[#allocation2 + $0x10] sm:$0xff]
    %v53 = vld [vmem:[#allocation2 + $0x18] sm:$0xff]
    %v54 = vld [vmem:[#allocation2 + $0x20] sm:$0xff]
    %v55 = vld [vmem:[#allocation2 + $0x28] sm:$0xff]
    %v56 = vld [vmem:[#allocation2 + $0x30] sm:$0xff]
    %v57 = vld [vmem:[#allocation2 + $0x38] sm:$0xff]
    %v58 = vld [vmem:[#allocation2 + $0x40] sm:$0xff]
    %v59 = vld [vmem:[#allocation2 + $0x48] sm:$0xff]
    %v60 = vld [vmem:[#allocation2 + $0x50] sm:$0xff]
    %v61 = vld [vmem:[#allocation2 + $0x58] sm:$0xff]
    %v62 = vld [vmem:[#allocation2 + $0x60] sm:$0xff]
    %v63 = vld [vmem:[#allocation2 + $0x68] sm:$0xff]
    %v64 = vld [vmem:[#allocation2 + $0x70] sm:$0xff]
    %v65 = vld [vmem:[#allocation2 + $0x78] sm:$0xff]
    %v66 = vld [vmem:[#allocation5] sm:$0xff]
    %v67 = vld [vmem:[#allocation5 + $0x8] sm:$0xff]
    %v68 = vld [vmem:[#allocation5 + $0x10] sm:$0xff]
    %v69 = vld [vmem:[#allocation5 + $0x18] sm:$0xff]
    %v70 = vld [vmem:[#allocation5 + $0x20] sm:$0xff]
    %v71 = vld [vmem:[#allocation5 + $0x28] sm:$0xff]
    %v72 = vld [vmem:[#allocation5 + $0x30] sm:$0xff]
    %v73 = vld [vmem:[#allocation5 + $0x38] sm:$0xff]
    %v74 = vld [vmem:[#allocation5 + $0x40] sm:$0xff]
    %v75 = vld [vmem:[#allocation5 + $0x48] sm:$0xff]
    %v76 = vld [vmem:[#allocation5 + $0x50] sm:$0xff]
    %v77 = vld [vmem:[#allocation5 + $0x58] sm:$0xff]
    %v78 = vld [vmem:[#allocation5 + $0x60] sm:$0xff]
    %v79 = vld [vmem:[#allocation5 + $0x68] sm:$0xff]
    %v80 = vld [vmem:[#allocation5 + $0x70] sm:$0xff]
    %v81 = vld [vmem:[#allocation5 + $0x78] sm:$0xff]
    %v82 = vlaneseq
    %v83 = vand.u32 %v82, 127
    %v84 = vld [vmem:[%s0] sm:$0xff]
    %85 = vset.pattern.permute.xlu0 0
    %86 = vperm.xlu0 %85, %v84
    %v87 = vpop.permute.xlu0 %86
    %vm88 = vcmp.eq.s32.totalorder %v83, %v87
    %v89 = vsel %vm88, 1, 0
    %v90 = vcvt.s32.f32 %v89
    %vm91 = vcmask 523264
    %v93 = vsel %vm91, %v90, 0
    %95 = vmatprep.subr.mxu0 %v51
    %96 = vmatpush1.msra.mxu0 %v50
    %97 = vmatprep.subr.mxu0 %v53
    %98 = vmatpush1.msra.mxu0 %v52
    %99 = vmatprep.subr.mxu0 %v55
    %100 = vmatpush1.msra.mxu0 %v54
    %101 = vmatprep.subr.mxu0 %v57
    %102 = vmatpush1.msra.mxu0 %v56
    %103 = vmatprep.subr.mxu0 %v59
    %104 = vmatpush1.msra.mxu0 %v58
    %105 = vmatprep.subr.mxu0 %v61
    %106 = vmatpush1.msra.mxu0 %v60
    %107 = vmatprep.subr.mxu0 %v63
    %108 = vmatpush1.msra.mxu0 %v62
    %109 = vmatprep.subr.mxu0 %v65
    %110 = vmatpush1.msra.mxu0 %v64
    %111 = vmatprep.subr.mxu0 0.0
    %112 = vmatpush1.msra.mxu0 0.0
    %113 = vmatprep.subr.mxu0 0.0
    %114 = vmatpush1.msra.mxu0 0.0
    %115 = vmatprep.subr.mxu0 0.0
    %116 = vmatpush1.msra.mxu0 0.0
    %117 = vmatprep.subr.mxu0 0.0
    %118 = vmatpush1.msra.mxu0 0.0
    %119 = vmatprep.subr.mxu0 0.0
    %120 = vmatpush1.msra.mxu0 0.0
    %121 = vmatprep.subr.mxu0 0.0
    %122 = vmatpush1.msra.mxu0 0.0
    %123 = vmatprep.subr.mxu0 0.0
    %124 = vmatpush1.msra.mxu0 0.0
    %125 = vmatprep.subr.mxu0 0.0
    %126 = vmatpush1.msra.mxu0 0.0
    %127 = vmatprep.subr.mxu0 0.0
    %128 = vmatpush1.msra.mxu0 0.0
    %129 = vmatprep.subr.mxu0 0.0
    %130 = vmatpush1.msra.mxu0 0.0
    %131 = vmatprep.subr.mxu0 0.0
    %132 = vmatpush1.msra.mxu0 0.0
    %133 = vmatprep.subr.mxu0 0.0
    %134 = vmatpush1.msra.mxu0 0.0
    %135 = vmatprep.subr.mxu0 0.0
    %136 = vmatpush1.msra.mxu0 0.0
    %137 = vmatprep.subr.mxu0 0.0
    %138 = vmatpush1.msra.mxu0 0.0
    %139 = vmatprep.subr.mxu0 0.0
    %140 = vmatpush1.msra.mxu0 0.0
    %141 = vmatprep.subr.mxu0 0.0
    %142 = vmatpush1.msra.mxu0 0.0
    %143 = vmatprep.subr.mxu0 0.0
    %144 = vmatpush1.msra.mxu0 0.0
    %145 = vmatprep.subr.mxu0 0.0
    %146 = vmatpush1.msra.mxu0 0.0
    %147 = vmatprep.subr.mxu0 0.0
    %148 = vmatpush1.msra.mxu0 0.0
    %149 = vmatprep.subr.mxu0 0.0
    %150 = vmatpush1.msra.mxu0 0.0
    %151 = vmatprep.subr.mxu0 0.0
    %152 = vmatpush1.msra.mxu0 0.0
    %153 = vmatprep.subr.mxu0 0.0
    %154 = vmatpush1.msra.mxu0 0.0
    %155 = vmatprep.subr.mxu0 0.0
    %156 = vmatpush1.msra.mxu0 0.0
    %157 = vmatprep.subr.mxu0 0.0
    %158 = vmatpush1.msra.mxu0 0.0
    %159 = vmatprep.mubr.f32.mxu0 0.0
    %160 = vmatmul.mubr.f32.gmra.mrb[0].mxu0 %v93
    %v161 = vpop.f32.mrb[0].mxu0
    %v162 = vadd.f32 0.0, %v161
    %v163 = vpop.f32.mrb[0].mxu0
    %v164 = vadd.f32 0.0, %v163
    %165 = vdwg.mxu0
    %v166 = vld [vmem:[%s1] sm:$0xff]
    %167 = vset.pattern.permute.xlu0 0
    %168 = vperm.xlu0 %167, %v166
    %v169 = vpop.permute.xlu0 %168
    %vm170 = vcmp.eq.s32.totalorder %v83, %v169
    %v171 = vsel %vm170, 1, 0
    %v172 = vcvt.s32.f32 %v171
    %v174 = vsel %vm91, %v172, 0
    %176 = vmatprep.subr.mxu0 %v67
    %177 = vmatpush1.msra.mxu0 %v66
    %178 = vmatprep.subr.mxu0 %v69
    %179 = vmatpush1.msra.mxu0 %v68
    %180 = vmatprep.subr.mxu0 %v71
    %181 = vmatpush1.msra.mxu0 %v70
    %182 = vmatprep.subr.mxu0 %v73
    %183 = vmatpush1.msra.mxu0 %v72
    %184 = vmatprep.subr.mxu0 %v75
    %185 = vmatpush1.msra.mxu0 %v74
    %186 = vmatprep.subr.mxu0 %v77
    %187 = vmatpush1.msra.mxu0 %v76
    %188 = vmatprep.subr.mxu0 %v79
    %189 = vmatpush1.msra.mxu0 %v78
    %190 = vmatprep.subr.mxu0 %v81
    %191 = vmatpush1.msra.mxu0 %v80
    %192 = vmatprep.subr.mxu0 0.0
    %193 = vmatpush1.msra.mxu0 0.0
    %194 = vmatprep.subr.mxu0 0.0
    %195 = vmatpush1.msra.mxu0 0.0
    %196 = vmatprep.subr.mxu0 0.0
    %197 = vmatpush1.msra.mxu0 0.0
    %198 = vmatprep.subr.mxu0 0.0
    %199 = vmatpush1.msra.mxu0 0.0
    %200 = vmatprep.subr.mxu0 0.0
    %201 = vmatpush1.msra.mxu0 0.0
    %202 = vmatprep.subr.mxu0 0.0
    %203 = vmatpush1.msra.mxu0 0.0
    %204 = vmatprep.subr.mxu0 0.0
    %205 = vmatpush1.msra.mxu0 0.0
    %206 = vmatprep.subr.mxu0 0.0
    %207 = vmatpush1.msra.mxu0 0.0
    %208 = vmatprep.subr.mxu0 0.0
    %209 = vmatpush1.msra.mxu0 0.0
    %210 = vmatprep.subr.mxu0 0.0
    %211 = vmatpush1.msra.mxu0 0.0
    %212 = vmatprep.subr.mxu0 0.0
    %213 = vmatpush1.msra.mxu0 0.0
    %214 = vmatprep.subr.mxu0 0.0
    %215 = vmatpush1.msra.mxu0 0.0
    %216 = vmatprep.subr.mxu0 0.0
    %217 = vmatpush1.msra.mxu0 0.0
    %218 = vmatprep.subr.mxu0 0.0
    %219 = vmatpush1.msra.mxu0 0.0
    %220 = vmatprep.subr.mxu0 0.0
    %221 = vmatpush1.msra.mxu0 0.0
    %222 = vmatprep.subr.mxu0 0.0
    %223 = vmatpush1.msra.mxu0 0.0
    %224 = vmatprep.subr.mxu0 0.0
    %225 = vmatpush1.msra.mxu0 0.0
    %226 = vmatprep.subr.mxu0 0.0
    %227 = vmatpush1.msra.mxu0 0.0
    %228 = vmatprep.subr.mxu0 0.0
    %229 = vmatpush1.msra.mxu0 0.0
    %230 = vmatprep.subr.mxu0 0.0
    %231 = vmatpush1.msra.mxu0 0.0
    %232 = vmatprep.subr.mxu0 0.0
    %233 = vmatpush1.msra.mxu0 0.0
    %234 = vmatprep.subr.mxu0 0.0
    %235 = vmatpush1.msra.mxu0 0.0
    %236 = vmatprep.subr.mxu0 0.0
    %237 = vmatpush1.msra.mxu0 0.0
    %238 = vmatprep.subr.mxu0 0.0
    %239 = vmatpush1.msra.mxu0 0.0
    %240 = vmatprep.mubr.f32.mxu0 0.0
    %241 = vmatmul.mubr.f32.gmra.mrb[0].mxu0 %v174
    %v242 = vpop.f32.mrb[0].mxu0
    %v243 = vadd.f32 0.0, %v242
    %v244 = vpop.f32.mrb[0].mxu0
    %v245 = vadd.f32 0.0, %v244
    %246 = vdwg.mxu0
    %v247 = vld [vmem:[%s2] sm:$0xff]
    %248 = vset.pattern.permute.xlu0 0
    %249 = vperm.xlu0 %248, %v247
    %v250 = vpop.permute.xlu0 %249
    %vm251 = vcmp.eq.s32.totalorder %v83, %v250
    %v252 = vsel %vm251, 1, 0
    %v253 = vcvt.s32.f32 %v252
    %v255 = vsel %vm91, %v253, 0
    %257 = vmatprep.subr.mxu0 %v67
    %258 = vmatpush1.msra.mxu0 %v66
    %259 = vmatprep.subr.mxu0 %v69
    %260 = vmatpush1.msra.mxu0 %v68
    %261 = vmatprep.subr.mxu0 %v71
    %262 = vmatpush1.msra.mxu0 %v70
    %263 = vmatprep.subr.mxu0 %v73
    %264 = vmatpush1.msra.mxu0 %v72
    %265 = vmatprep.subr.mxu0 %v75
    %266 = vmatpush1.msra.mxu0 %v74
    %267 = vmatprep.subr.mxu0 %v77
    %268 = vmatpush1.msra.mxu0 %v76
    %269 = vmatprep.subr.mxu0 %v79
    %270 = vmatpush1.msra.mxu0 %v78
    %271 = vmatprep.subr.mxu0 %v81
    %272 = vmatpush1.msra.mxu0 %v80
    %273 = vmatprep.subr.mxu0 0.0
    %274 = vmatpush1.msra.mxu0 0.0
    %275 = vmatprep.subr.mxu0 0.0
    %276 = vmatpush1.msra.mxu0 0.0
    %277 = vmatprep.subr.mxu0 0.0
    %278 = vmatpush1.msra.mxu0 0.0
    %279 = vmatprep.subr.mxu0 0.0
    %280 = vmatpush1.msra.mxu0 0.0
    %281 = vmatprep.subr.mxu0 0.0
    %282 = vmatpush1.msra.mxu0 0.0
    %283 = vmatprep.subr.mxu0 0.0
    %284 = vmatpush1.msra.mxu0 0.0
    %285 = vmatprep.subr.mxu0 0.0
    %286 = vmatpush1.msra.mxu0 0.0
    %287 = vmatprep.subr.mxu0 0.0
    %288 = vmatpush1.msra.mxu0 0.0
    %289 = vmatprep.subr.mxu0 0.0
    %290 = vmatpush1.msra.mxu0 0.0
    %291 = vmatprep.subr.mxu0 0.0
    %292 = vmatpush1.msra.mxu0 0.0
    %293 = vmatprep.subr.mxu0 0.0
    %294 = vmatpush1.msra.mxu0 0.0
    %295 = vmatprep.subr.mxu0 0.0
    %296 = vmatpush1.msra.mxu0 0.0
    %297 = vmatprep.subr.mxu0 0.0
    %298 = vmatpush1.msra.mxu0 0.0
    %299 = vmatprep.subr.mxu0 0.0
    %300 = vmatpush1.msra.mxu0 0.0
    %301 = vmatprep.subr.mxu0 0.0
    %302 = vmatpush1.msra.mxu0 0.0
    %303 = vmatprep.subr.mxu0 0.0
    %304 = vmatpush1.msra.mxu0 0.0
    %305 = vmatprep.subr.mxu0 0.0
    %306 = vmatpush1.msra.mxu0 0.0
    %307 = vmatprep.subr.mxu0 0.0
    %308 = vmatpush1.msra.mxu0 0.0
    %309 = vmatprep.subr.mxu0 0.0
    %310 = vmatpush1.msra.mxu0 0.0
    %311 = vmatprep.subr.mxu0 0.0
    %312 = vmatpush1.msra.mxu0 0.0
    %313 = vmatprep.subr.mxu0 0.0
    %314 = vmatpush1.msra.mxu0 0.0
    %315 = vmatprep.subr.mxu0 0.0
    %316 = vmatpush1.msra.mxu0 0.0
    %317 = vmatprep.subr.mxu0 0.0
    %318 = vmatpush1.msra.mxu0 0.0
    %319 = vmatprep.subr.mxu0 0.0
    %320 = vmatpush1.msra.mxu0 0.0
    %321 = vmatprep.mubr.f32.mxu0 0.0
    %322 = vmatmul.mubr.f32.gmra.mrb[0].mxu0 %v255
    %v323 = vpop.f32.mrb[0].mxu0
    %v324 = vadd.f32 0.0, %v323
    %v325 = vpop.f32.mrb[0].mxu0
    %v326 = vadd.f32 0.0, %v325
    %327 = vdwg.mxu0
    %v328 = vmul.f32 %v162, %v243
    %v329 = vmul.f32 %v164, %v245
    %v330 = vadd.f32 %v328, %v329
    %331 = vadd.xlane.f32.xlu0 %v330
    %v332 = vpop.xlane.xlu0 %331
    %v333 = vmul.f32 %v162, %v324
    %v334 = vmul.f32 %v164, %v326
    %v335 = vadd.f32 %v333, %v334
    %336 = vadd.xlane.f32.xlu0 %v335
    %v337 = vpop.xlane.xlu0 %336
    %v338 = vmin.f32 %v332, 0.0
    %v339 = vand.u32 2147483647, %v332
    %v340 = vsub.f32 0.0, %v339
    %v341 = vmul.f32 %v340, 1.442695
    %v342 = vpow.pop %v341
    %v343 = vadd.f32 %v342, 1.0
    %v344 = vlog2.pop %v343
    %v345 = vmul.f32 %v344, 0.6931472
    %v346 = vmul.f32 -0.5, %v342
    %v347 = vadd.f32 %v346, 1.0
    %v348 = vmul.f32 %v347, %v342
    %v349 = vand.u32 2147483647, %v342
    %vm350 = vcmp.lt.f32.partialorder %v349, 0.0004427343
    %v351 = vsel %vm350, %v348, %v345
    %v352 = vsub.f32 %v338, %v351
    %v353 = vsub.f32 0.0, %v337
    %v354 = vmin.f32 %v353, 0.0
    %v355 = vand.u32 2147483647, %v353
    %v356 = vsub.f32 0.0, %v355
    %v357 = vmul.f32 %v356, 1.442695
    %v358 = vpow.pop %v357
    %v359 = vadd.f32 %v358, 1.0
    %v360 = vlog2.pop %v359
    %v361 = vmul.f32 %v360, 0.6931472
    %v362 = vmul.f32 -0.5, %v358
    %v363 = vadd.f32 %v362, 1.0
    %v364 = vmul.f32 %v363, %v358
    %v365 = vand.u32 2147483647, %v358
    %vm366 = vcmp.lt.f32.partialorder %v365, 0.0004427343
    %v367 = vsel %vm366, %v364, %v361
    %v368 = vsub.f32 %v354, %v367
    %v369 = vadd.f32 %v352, %v368
    %v370 = vlaneseq
    %v371 = vshrl.u32 %v370, 7
    %v372 = vstv %s49
    %v373 = vadd.s32 %v372, %v371
    %vm374 = vcmp.lt.s32.totalorder %v373, 8
    %v375 = vsel %vm374, %v369, 0.0
    %vm376 = vcmask 7168
    %v377 = vsel %vm376, %v375, 0.0
    %378 = vadd.xlane.f32.xlu0 %v377
    %v379 = vpop.xlane.xlu0 %378
    %v380 = vrot.slane %v379, 4
    %v381 = vadd.f32 %v379, %v380
    %v382 = vrot.slane %v381, 2
    %v383 = vadd.f32 %v381, %v382
    %v384 = vrot.slane %v383, 1
    %v385 = vadd.f32 %v383, %v384
    %s386 = vtos %v385
    %s387 = ssub.f32 0.0, %s386
    %v388 = vstv %s387
    %v389 = vadd.f32 %v388, 0.0
    %390 = vst [vmem:[#allocation7] sm:$0xff] %v389
    // Predicated region
    $region30: #{tpu_custom_call.1} parent=1 // pred_check
      _
    $region31: #{tpu_custom_call.1} parent=1 // pred_check_branch
      %392 = sbr.rel (0) target = $region33
    $region32: #{tpu_custom_call.1} parent=1 // pred_region
      %s394 = ssub.s32 128, 128
      %395 = vsyncadd [#allocation4], %s394
      %s397 = sshll.u32 [#allocation7], 4
      %s398 = int_to_ptr.vmem [resolvable:$true] %s397
      %400 = dma.vmem_to_hbm [thread:$0]  %s398, 128, %s5, [#allocation4]
    $region33: #{tpu_custom_call.1} parent=1 // pred_fallthru
      _
    // Predicated region
    $region34: #{tpu_custom_call.1} parent=1 // pred_check
      _
    $region35: #{tpu_custom_call.1} parent=1 // pred_check_branch
      %402 = sbr.rel (0) target = $region37
    $region36: #{tpu_custom_call.1} parent=1 // pred_region
      %403 = dma.done [#allocation4], 128
    $region37: #{tpu_custom_call.1} parent=1 // pred_fallthru
      _
    %404 = vsyncpa [#allocation3], 1
    %405 = vsyncpa [#allocation6], 1
    %406 = vsyncpa [#allocation4], 1

</llo_original>
